<compile_context>
chip_gen: v7x
topology: tpu7x:2x2x1
jax: 0.10.0
libtpu: 0.0.40
codegen_flags: <defaults>
</compile_context>

<pallas_src>
import functools

import jax
import jax.numpy as jnp
from jax import lax
from jax.experimental import pallas as pl
from jax.experimental.pallas import tpu as pltpu

_SQRT2 = 1.4142135623730951


def _pick_tile(b, target=512):
    """Largest 128-multiple <= target that divides b, else b (single block)."""
    if b <= target:
        return b
    t = (target // 128) * 128
    while t >= 128:
        if b % t == 0:
            return t
        t -= 128
    return b


def _vmem_limit_bytes(batch, d, c, tile):
    tile_f32 = 4 * tile * tile
    est = (8 * tile_f32                            # live (tile, tile) f32 temporaries
           + 2 * 2 * 4 * tile * max(d, 128)        # double-buffered emb row/col blocks
           + 2 * 4 * tile * max(c, 128)            # double-buffered logits block
           + 12 * 4 * tile * 128                   # (tile,1)-ish blocks + scratches (lane pad)
           + (4 << 20))                            # headroom for Mosaic internals
    try:
        cap = int(pltpu.get_tpu_info().vmem_capacity_bytes * 0.8)
    except Exception:  # pragma: no cover - conservative fallback (safe on v7x)
        cap = 48 << 20
    return int(min(max(est, 32 << 20), cap))


def _dcor_loss_kernel(emb_i_ref, emb_j_ref, sq_i_ref, sq_j_ref,
                      lab_i_ref, lab_j_ref, pred_ref, out_ref,
                      row_a_ref, row_a2_ref, row_am_ref, row_ns_ref, *,
                      batch, tile_m, tile_n, use_bf16_gram):
    i = pl.program_id(0)
    j = pl.program_id(1)
    nj = pl.num_programs(1)

    @pl.when(j == 0)
    def _init():
        row_a_ref[...] = jnp.zeros_like(row_a_ref)
        row_a2_ref[...] = jnp.zeros_like(row_a2_ref)
        row_am_ref[...] = jnp.zeros_like(row_am_ref)
        row_ns_ref[...] = jnp.zeros_like(row_ns_ref)

    # --- pairwise distance tile via the Gram trick (MXU) ---------------------
    if use_bf16_gram:
        gi = emb_i_ref[...].astype(jnp.bfloat16)
        gj = emb_j_ref[...].astype(jnp.bfloat16)
    else:
        gi = emb_i_ref[...].astype(jnp.float32)
        gj = emb_j_ref[...].astype(jnp.float32)
    gram = lax.dot_general(gi, gj, (((1,), (1,)), ((), ())),
                           preferred_element_type=jnp.float32)      # (TM, TN)

    sqi = sq_i_ref[...].astype(jnp.float32)                          # (TM, 1)
    sqj = sq_j_ref[...].astype(jnp.float32)                          # (1, TN)
    d2 = jnp.maximum(sqi + sqj - 2.0 * gram, 0.0)

    # exact zeros on the global diagonal (matches torch.cdist(x, x))
    gri = i * tile_m + lax.broadcasted_iota(jnp.int32, (tile_m, tile_n), 0)
    gcj = j * tile_n + lax.broadcasted_iota(jnp.int32, (tile_m, tile_n), 1)
    d2 = jnp.where(gri == gcj, 0.0, d2)
    dist = jnp.sqrt(d2)

    # --- label same-class mask (VPU); one-hot rows differ by exactly sqrt(2) --
    same = lab_i_ref[...] == lab_j_ref[...]                          # (TM, TN) bool

    # --- fused per-row accumulation (single sweep over the tile) -------------
    row_a_ref[...] += jnp.sum(dist, axis=1, keepdims=True)
    row_a2_ref[...] += jnp.sum(d2, axis=1, keepdims=True)
    row_am_ref[...] += jnp.sum(jnp.where(same, 0.0, dist), axis=1, keepdims=True)
    row_ns_ref[...] += jnp.sum(jnp.where(same, 1.0, 0.0), axis=1, keepdims=True)

    @pl.when(j == nj - 1)
    def _finalize():
        ra = row_a_ref[...]                      # RA_i  (TM, 1)
        ra2 = row_a2_ref[...]                    # sum_j A_ij^2 per row
        ram = row_am_ref[...]                    # sum_j A_ij [l_i != l_j] per row
        ns = row_ns_ref[...]                     # n_{l_i} per row
        bm = jnp.float32(batch) - ns             # B - n_{l_i}

        p_a2 = jnp.sum(ra2)
        p_am = jnp.sum(ram)
        p_ra = jnp.sum(ra)
        p_ra2 = jnp.sum(ra * ra)
        p_rabm = jnp.sum(ra * bm)
        p_ns = jnp.sum(ns)
        p_bm2 = jnp.sum(bm * bm)

        # cross-entropy partial for this row block (labels assumed in [0, C))
        logits = pred_ref[...].astype(jnp.float32)                   # (TM, C)
        mx = jnp.max(logits, axis=1, keepdims=True)
        lse = jnp.log(jnp.sum(jnp.exp(logits - mx), axis=1, keepdims=True)) + mx
        cls = lax.broadcasted_iota(jnp.int32, logits.shape, 1)
        picked = jnp.sum(jnp.where(cls == lab_i_ref[...], logits, 0.0),
                         axis=1, keepdims=True)
        p_ce = jnp.sum(lse - picked)

        vals = (p_a2, p_am, p_ra, p_ra2, p_rabm, p_ns, p_bm2, p_ce)
        slot = lax.broadcasted_iota(jnp.int32, (1, 8, 128), 1)
        blk = jnp.zeros((1, 8, 128), jnp.float32)
        for k, v in enumerate(vals):
            blk = jnp.where(slot == k, v, blk)
        out_ref[...] = blk


def dcor_loss(embeddings, pred, labels, *, num_classes=10, dcor_weighting=0.1,
              use_bf16_gram=None, block_target=512):
    """Forward pass of DcorLoss. Returns a scalar float32 loss."""
    if isinstance(embeddings, (list, tuple)):
        embeddings = embeddings[0]
    labels = labels.astype(jnp.int32)

    B, D = embeddings.shape
    C = pred.shape[1]
    del num_classes  # class count comes from pred (as CrossEntropyLoss requires)

    tile = _pick_tile(B, block_target)
    n_i = B // tile
    n_j = B // tile

    if use_bf16_gram is None:
        use_bf16_gram = (embeddings.dtype == jnp.bfloat16) or (B * D >= (1 << 20))

    # Tiny O(B*D) fused reduction; avoids per-tile recompute and any in-kernel
    # transpose.  No full f32 copy of `embeddings` is ever materialized.
    sq = jnp.sum(embeddings.astype(jnp.float32) ** 2, axis=1)        # (B,)
    sq_col = sq.reshape(B, 1)
    sq_row = sq.reshape(1, B)
    lab_col = labels.reshape(B, 1)
    lab_row = labels.reshape(1, B)

    kernel = functools.partial(
        _dcor_loss_kernel, batch=B, tile_m=tile, tile_n=tile,
        use_bf16_gram=bool(use_bf16_gram))

    itemsize_e = jnp.dtype(embeddings.dtype).itemsize
    itemsize_p = jnp.dtype(pred.dtype).itemsize
    cost = pl.CostEstimate(
        flops=2 * B * B * D + 16 * B * B + 8 * B * C,
        transcendentals=B * B + B * C,
        bytes_accessed=(B * D * itemsize_e * (1 + n_i) + B * C * itemsize_p
                        + 16 * B + n_i * 8 * 128 * 4),
    )

    out = pl.pallas_call(
        kernel,
        out_shape=jax.ShapeDtypeStruct((n_i, 8, 128), jnp.float32),
        grid=(n_i, n_j),
        in_specs=[
            pl.BlockSpec((tile, D), lambda i, j: (i, 0)),   # emb rows (row block)
            pl.BlockSpec((tile, D), lambda i, j: (j, 0)),   # emb rows (col block)
            pl.BlockSpec((tile, 1), lambda i, j: (i, 0)),   # ||e||^2 (row block)
            pl.BlockSpec((1, tile), lambda i, j: (0, j)),   # ||e||^2 (col block)
            pl.BlockSpec((tile, 1), lambda i, j: (i, 0)),   # labels  (row block)
            pl.BlockSpec((1, tile), lambda i, j: (0, j)),   # labels  (col block)
            pl.BlockSpec((tile, C), lambda i, j: (i, 0)),   # logits  (row block)
        ],
        out_specs=pl.BlockSpec((1, 8, 128), lambda i, j: (i, 0, 0)),
        scratch_shapes=[pltpu.VMEM((tile, 1), jnp.float32)] * 4,
        compiler_params=pltpu.CompilerParams(
            dimension_semantics=("parallel", "arbitrary"),
            vmem_limit_bytes=_vmem_limit_bytes(B, D, C, tile)),
        cost_estimate=cost,
    )(embeddings, embeddings, sq_col, sq_row, lab_col, lab_row, pred)

    # --- combine per-row-block partials (a handful of scalar ops) -------------
    parts = jnp.sum(out[:, :, 0], axis=0)        # (8,)
    s_a2, s_am, s_ra, s_ra2, s_rabm, s_ns, s_bm2, ce_sum = [parts[k] for k in range(8)]

    bf = float(B)
    n2 = bf * bf
    sa = s_ra                                     # sum_ij A_ij
    sl = _SQRT2 * (n2 - s_ns)                     # sum_ij L_ij
    sum_al = _SQRT2 * s_am                        # sum_ij A_ij L_ij
    sum_rarl = _SQRT2 * s_rabm                    # sum_i RA_i RL_i
    sum_l2 = 2.0 * (n2 - s_ns)                    # sum_ij L_ij^2
    sum_rl2 = 2.0 * s_bm2                         # sum_i RL_i^2

    dcov = (sum_al - (2.0 / bf) * sum_rarl + sa * sl / n2) / n2
    dvar_e = (s_a2 - (2.0 / bf) * s_ra2 + sa * sa / n2) / n2
    dvar_l = (sum_l2 - (2.0 / bf) * sum_rl2 + sl * sl / n2) / n2
    dcor = dcov / (jnp.sqrt(jnp.maximum(dvar_e * dvar_l, 0.0)) + 1e-8)
    return jnp.float32(dcor_weighting) * dcor + ce_sum / bf


def _dcor_loss_ref(embeddings, pred, labels, *, num_classes=10, dcor_weighting=0.1):
    """Pure-JAX reference mirroring the PyTorch module (for sanity checking)."""
    onehot = jax.nn.one_hot(labels.astype(jnp.int32), num_classes, dtype=jnp.float32)

    def dist(x):
        d2 = jnp.sum((x[:, None, :] - x[None, :, :]) ** 2, axis=-1)
        return jnp.sqrt(jnp.maximum(d2, 0.0))

    def dc(m):
        return m - m.mean(axis=1, keepdims=True) - m.mean(axis=0, keepdims=True) + m.mean()

    de = dc(dist(embeddings.astype(jnp.float32)))
    dl = dc(dist(onehot))
    dcov = jnp.mean(de * dl)
    dcor = dcov / (jnp.sqrt(jnp.mean(de**2) * jnp.mean(dl**2)) + 1e-8)
    logp = jax.nn.log_softmax(pred.astype(jnp.float32), axis=-1)
    ce = -jnp.mean(jnp.sum(onehot * logp, axis=-1))
    return dcor_weighting * dcor + ce


if __name__ == "__main__":
    key = jax.random.PRNGKey(0)

    #  (B, D, C, block_target): the first two exercise the single-block path,
    #  the last one exercises the ("parallel", "arbitrary") 2x2 tiled grid.
    configs = [
        (8, 32, 10, None),
        (32, 128, 10, None),
        (256, 32, 10, 128),
    ]
    for (B, D, C, tgt) in configs:
        key, k_emb, k_pred, k_lbl = jax.random.split(key, 4)
        embeddings = jax.random.normal(k_emb, (B, D), dtype=jnp.float32)
        pred = jax.random.normal(k_pred, (B, C), dtype=jnp.float32)
        labels = jax.random.randint(k_lbl, (B,), 0, C)

        kwargs = {} if tgt is None else {"block_target": tgt}
        loss = dcor_loss(embeddings, pred, labels, num_classes=C,
                         dcor_weighting=0.1, **kwargs)
        jax.block_until_ready(loss)

        ref = _dcor_loss_ref(embeddings, pred, labels, num_classes=C,
                             dcor_weighting=0.1)
        assert jnp.allclose(loss, ref, rtol=1e-3, atol=1e-3), \
            (B, D, C, float(loss), float(ref))

    print("KERNEL_OK")
</pallas_src>

<mosaic_0001>
module attributes {stable_mosaic.version = 11 : i64} {
  func.func @_dcor_loss_kernel(%arg0: i32, %arg1: i32, %arg2: memref<8x32xf32, #tpu.memory_space<vmem>>, %arg3: memref<8x32xf32, #tpu.memory_space<vmem>>, %arg4: memref<8x1xf32, #tpu.memory_space<vmem>>, %arg5: memref<1x8xf32, #tpu.memory_space<vmem>>, %arg6: memref<8x1xi32, #tpu.memory_space<vmem>>, %arg7: memref<1x8xi32, #tpu.memory_space<vmem>>, %arg8: memref<8x10xf32, #tpu.memory_space<vmem>>, %arg9: memref<1x8x128xf32, #tpu.memory_space<vmem>>, %arg10: memref<8x1xf32, #tpu.memory_space<vmem>>, %arg11: memref<8x1xf32, #tpu.memory_space<vmem>>, %arg12: memref<8x1xf32, #tpu.memory_space<vmem>>, %arg13: memref<8x1xf32, #tpu.memory_space<vmem>>) attributes {dimension_semantics = [#tpu.dimension_semantics<parallel>, #tpu.dimension_semantics<arbitrary>], iteration_bounds = array<i64: 1, 1>, scalar_prefetch = 0 : i64, scratch_operands = 4 : i64, tpu.core_type = #tpu.core_type<tc>, window_params = [{transform_indices = @transform_0, window_bounds = array<i64: 8, 32>}, {transform_indices = @transform_1, window_bounds = array<i64: 8, 32>}, {transform_indices = @transform_2, window_bounds = array<i64: 8, 1>}, {transform_indices = @transform_3, window_bounds = array<i64: 1, 8>}, {transform_indices = @transform_4, window_bounds = array<i64: 8, 1>}, {transform_indices = @transform_5, window_bounds = array<i64: 1, 8>}, {transform_indices = @transform_6, window_bounds = array<i64: 8, 10>}, {transform_indices = @transform_7, window_bounds = array<i64: 1, 8, 128>}]} {
    %c0_i32 = arith.constant 0 : i32
    %0 = arith.cmpi eq, %arg1, %c0_i32 : i32
    %1 = arith.extui %0 : i1 to i32
    %c0_i32_0 = arith.constant 0 : i32
    %2 = arith.cmpi ne, %1, %c0_i32_0 : i32
    scf.if %2 {
      %cst_41 = arith.constant 0.000000e+00 : f32
      %61 = vector.broadcast %cst_41 : f32 to vector<8x1xf32>
      %c0_42 = arith.constant 0 : index
      %c0_43 = arith.constant 0 : index
      %62 = vector.load %arg10[%c0_42, %c0_43] : memref<8x1xf32, #tpu.memory_space<vmem>>, vector<8x1xf32>
      tpu.vector_store %arg10[%c0_42, %c0_43], %61 {strides = array<i32>} : memref<8x1xf32, #tpu.memory_space<vmem>>, vector<8x1xf32>,
      %cst_44 = arith.constant 0.000000e+00 : f32
      %63 = vector.broadcast %cst_44 : f32 to vector<8x1xf32>
      %c0_45 = arith.constant 0 : index
      %c0_46 = arith.constant 0 : index
      %64 = vector.load %arg11[%c0_45, %c0_46] : memref<8x1xf32, #tpu.memory_space<vmem>>, vector<8x1xf32>
      tpu.vector_store %arg11[%c0_45, %c0_46], %63 {strides = array<i32>} : memref<8x1xf32, #tpu.memory_space<vmem>>, vector<8x1xf32>,
      %cst_47 = arith.constant 0.000000e+00 : f32
      %65 = vector.broadcast %cst_47 : f32 to vector<8x1xf32>
      %c0_48 = arith.constant 0 : index
      %c0_49 = arith.constant 0 : index
      %66 = vector.load %arg12[%c0_48, %c0_49] : memref<8x1xf32, #tpu.memory_space<vmem>>, vector<8x1xf32>
      tpu.vector_store %arg12[%c0_48, %c0_49], %65 {strides = array<i32>} : memref<8x1xf32, #tpu.memory_space<vmem>>, vector<8x1xf32>,
      %cst_50 = arith.constant 0.000000e+00 : f32
      %67 = vector.broadcast %cst_50 : f32 to vector<8x1xf32>
      %c0_51 = arith.constant 0 : index
      %c0_52 = arith.constant 0 : index
      %68 = vector.load %arg13[%c0_51, %c0_52] : memref<8x1xf32, #tpu.memory_space<vmem>>, vector<8x1xf32>
      tpu.vector_store %arg13[%c0_51, %c0_52], %67 {strides = array<i32>} : memref<8x1xf32, #tpu.memory_space<vmem>>, vector<8x1xf32>,
    } else {
    }
    %c0 = arith.constant 0 : index
    %c0_1 = arith.constant 0 : index
    %3 = vector.load %arg2[%c0, %c0_1] : memref<8x32xf32, #tpu.memory_space<vmem>>, vector<8x32xf32>
    %c0_2 = arith.constant 0 : index
    %c0_3 = arith.constant 0 : index
    %4 = vector.load %arg3[%c0_2, %c0_3] : memref<8x32xf32, #tpu.memory_space<vmem>>, vector<8x32xf32>
    %cst = arith.constant dense<0.000000e+00> : vector<8x8xf32>
    %5 = tpu.matmul %3, %4, %cst {dimension_numbers = #tpu.dot_dimension_numbers<[1], [1], [0], [0], [0, 0, 1, 0], [], []>} : vector<8x32xf32>, vector<8x32xf32>, vector<8x8xf32> -> vector<8x8xf32>
    %c0_4 = arith.constant 0 : index
    %c0_5 = arith.constant 0 : index
    %6 = vector.load %arg4[%c0_4, %c0_5] : memref<8x1xf32, #tpu.memory_space<vmem>>, vector<8x1xf32>
    %c0_6 = arith.constant 0 : index
    %c0_7 = arith.constant 0 : index
    %7 = vector.load %arg5[%c0_6, %c0_7] : memref<1x8xf32, #tpu.memory_space<vmem>>, vector<1x8xf32>
    %8 = vector.broadcast %6 : vector<8x1xf32> to vector<8x8xf32>
    %9 = vector.broadcast %7 : vector<1x8xf32> to vector<8x8xf32>
    %10 = arith.addf %8, %9 : vector<8x8xf32>
    %cst_8 = arith.constant 2.000000e+00 : f32
    %11 = vector.broadcast %cst_8 : f32 to vector<8x8xf32>
    %12 = arith.mulf %11, %5 : vector<8x8xf32>
    %13 = arith.subf %10, %12 : vector<8x8xf32>
    %cst_9 = arith.constant 0.000000e+00 : f32
    %14 = vector.broadcast %cst_9 : f32 to vector<8x8xf32>
    %15 = arith.maximumf %13, %14 : vector<8x8xf32>
    %c8_i32 = arith.constant 8 : i32
    %16 = arith.muli %arg0, %c8_i32 : i32
    %17 = tpu.iota {dimensions = array<i32: 0>} : vector<8x8xi32>
    %18 = vector.broadcast %16 : i32 to vector<8x8xi32>
    %19 = arith.addi %18, %17 : vector<8x8xi32>
    %c8_i32_10 = arith.constant 8 : i32
    %20 = arith.muli %arg1, %c8_i32_10 : i32
    %21 = tpu.iota {dimensions = array<i32: 1>} : vector<8x8xi32>
    %22 = vector.broadcast %20 : i32 to vector<8x8xi32>
    %23 = arith.addi %22, %21 : vector<8x8xi32>
    %24 = arith.cmpi eq, %19, %23 : vector<8x8xi32>
    %cst_11 = arith.constant 0.000000e+00 : f32
    %25 = vector.broadcast %cst_11 : f32 to vector<8x8xf32>
    %26 = arith.select %24, %25, %15 : vector<8x8xi1>, vector<8x8xf32>
    %27 = math.sqrt %26 : vector<8x8xf32>
    %c0_12 = arith.constant 0 : index
    %c0_13 = arith.constant 0 : index
    %28 = vector.load %arg6[%c0_12, %c0_13] : memref<8x1xi32, #tpu.memory_space<vmem>>, vector<8x1xi32>
    %c0_14 = arith.constant 0 : index
    %c0_15 = arith.constant 0 : index
    %29 = vector.load %arg7[%c0_14, %c0_15] : memref<1x8xi32, #tpu.memory_space<vmem>>, vector<1x8xi32>
    %30 = vector.broadcast %28 : vector<8x1xi32> to vector<8x8xi32>
    %31 = vector.broadcast %29 : vector<1x8xi32> to vector<8x8xi32>
    %32 = arith.cmpi eq, %30, %31 : vector<8x8xi32>
    %c0_16 = arith.constant 0 : index
    %c0_17 = arith.constant 0 : index
    %33 = vector.load %arg10[%c0_16, %c0_17] : memref<8x1xf32, #tpu.memory_space<vmem>>, vector<8x1xf32>
    %cst_18 = arith.constant dense<0.000000e+00> : vector<8xf32>
    %34 = vector.multi_reduction <add>, %27, %cst_18 [1] : vector<8x8xf32> to vector<8xf32>
    %35 = vector.shape_cast %34 : vector<8xf32> to vector<8x1xf32>
    %36 = arith.addf %33, %35 : vector<8x1xf32>
    %c0_19 = arith.constant 0 : index
    %c0_20 = arith.constant 0 : index
    %37 = vector.load %arg10[%c0_19, %c0_20] : memref<8x1xf32, #tpu.memory_space<vmem>>, vector<8x1xf32>
    tpu.vector_store %arg10[%c0_19, %c0_20], %36 {strides = array<i32>} : memref<8x1xf32, #tpu.memory_space<vmem>>, vector<8x1xf32>,
    %c0_21 = arith.constant 0 : index
    %c0_22 = arith.constant 0 : index
    %38 = vector.load %arg11[%c0_21, %c0_22] : memref<8x1xf32, #tpu.memory_space<vmem>>, vector<8x1xf32>
    %cst_23 = arith.constant dense<0.000000e+00> : vector<8xf32>
    %39 = vector.multi_reduction <add>, %26, %cst_23 [1] : vector<8x8xf32> to vector<8xf32>
    %40 = vector.shape_cast %39 : vector<8xf32> to vector<8x1xf32>
    %41 = arith.addf %38, %40 : vector<8x1xf32>
    %c0_24 = arith.constant 0 : index
    %c0_25 = arith.constant 0 : index
    %42 = vector.load %arg11[%c0_24, %c0_25] : memref<8x1xf32, #tpu.memory_space<vmem>>, vector<8x1xf32>
    tpu.vector_store %arg11[%c0_24, %c0_25], %41 {strides = array<i32>} : memref<8x1xf32, #tpu.memory_space<vmem>>, vector<8x1xf32>,
    %c0_26 = arith.constant 0 : index
    %c0_27 = arith.constant 0 : index
    %43 = vector.load %arg12[%c0_26, %c0_27] : memref<8x1xf32, #tpu.memory_space<vmem>>, vector<8x1xf32>
    %cst_28 = arith.constant 0.000000e+00 : f32
    %44 = vector.broadcast %cst_28 : f32 to vector<8x8xf32>
    %45 = arith.select %32, %44, %27 : vector<8x8xi1>, vector<8x8xf32>
    %cst_29 = arith.constant dense<0.000000e+00> : vector<8xf32>
    %46 = vector.multi_reduction <add>, %45, %cst_29 [1] : vector<8x8xf32> to vector<8xf32>
    %47 = vector.shape_cast %46 : vector<8xf32> to vector<8x1xf32>
    %48 = arith.addf %43, %47 : vector<8x1xf32>
    %c0_30 = arith.constant 0 : index
    %c0_31 = arith.constant 0 : index
    %49 = vector.load %arg12[%c0_30, %c0_31] : memref<8x1xf32, #tpu.memory_space<vmem>>, vector<8x1xf32>
    tpu.vector_store %arg12[%c0_30, %c0_31], %48 {strides = array<i32>} : memref<8x1xf32, #tpu.memory_space<vmem>>, vector<8x1xf32>,
    %c0_32 = arith.constant 0 : index
    %c0_33 = arith.constant 0 : index
    %50 = vector.load %arg13[%c0_32, %c0_33] : memref<8x1xf32, #tpu.memory_space<vmem>>, vector<8x1xf32>
    %cst_34 = arith.constant 1.000000e+00 : f32
    %cst_35 = arith.constant 0.000000e+00 : f32
    %51 = vector.broadcast %cst_34 : f32 to vector<8x8xf32>
    %52 = vector.broadcast %cst_35 : f32 to vector<8x8xf32>
    %53 = arith.select %32, %51, %52 : vector<8x8xi1>, vector<8x8xf32>
    %cst_36 = arith.constant dense<0.000000e+00> : vector<8xf32>
    %54 = vector.multi_reduction <add>, %53, %cst_36 [1] : vector<8x8xf32> to vector<8xf32>
    %55 = vector.shape_cast %54 : vector<8xf32> to vector<8x1xf32>
    %56 = arith.addf %50, %55 : vector<8x1xf32>
    %c0_37 = arith.constant 0 : index
    %c0_38 = arith.constant 0 : index
    %57 = vector.load %arg13[%c0_37, %c0_38] : memref<8x1xf32, #tpu.memory_space<vmem>>, vector<8x1xf32>
    tpu.vector_store %arg13[%c0_37, %c0_38], %56 {strides = array<i32>} : memref<8x1xf32, #tpu.memory_space<vmem>>, vector<8x1xf32>,
    %c0_i32_39 = arith.constant 0 : i32
    %58 = arith.cmpi eq, %arg1, %c0_i32_39 : i32
    %59 = arith.extui %58 : i1 to i32
    %c0_i32_40 = arith.constant 0 : i32
    %60 = arith.cmpi ne, %59, %c0_i32_40 : i32
    scf.if %60 {
      %c0_41 = arith.constant 0 : index
      %c0_42 = arith.constant 0 : index
      %61 = vector.load %arg10[%c0_41, %c0_42] : memref<8x1xf32, #tpu.memory_space<vmem>>, vector<8x1xf32>
      %c0_43 = arith.constant 0 : index
      %c0_44 = arith.constant 0 : index
      %62 = vector.load %arg11[%c0_43, %c0_44] : memref<8x1xf32, #tpu.memory_space<vmem>>, vector<8x1xf32>
      %c0_45 = arith.constant 0 : index
      %c0_46 = arith.constant 0 : index
      %63 = vector.load %arg12[%c0_45, %c0_46] : memref<8x1xf32, #tpu.memory_space<vmem>>, vector<8x1xf32>
      %c0_47 = arith.constant 0 : index
      %c0_48 = arith.constant 0 : index
      %64 = vector.load %arg13[%c0_47, %c0_48] : memref<8x1xf32, #tpu.memory_space<vmem>>, vector<8x1xf32>
      %cst_49 = arith.constant 8.000000e+00 : f32
      %65 = vector.broadcast %cst_49 : f32 to vector<8x1xf32>
      %66 = arith.subf %65, %64 : vector<8x1xf32>
      %67 = vector.shape_cast %62 : vector<8x1xf32> to vector<1x8x1xf32>
      %cst_50 = arith.constant dense<0.000000e+00> : vector<1xf32>
      %68 = vector.multi_reduction <add>, %67, %cst_50 [1, 2] : vector<1x8x1xf32> to vector<1xf32>
      %69 = vector.shape_cast %68 : vector<1xf32> to vector<1x1x1xf32>
      %70 = vector.extract %69[0, 0, 0] : f32 from vector<1x1x1xf32>
      %71 = vector.shape_cast %63 : vector<8x1xf32> to vector<1x8x1xf32>
      %cst_51 = arith.constant dense<0.000000e+00> : vector<1xf32>
      %72 = vector.multi_reduction <add>, %71, %cst_51 [1, 2] : vector<1x8x1xf32> to vector<1xf32>
      %73 = vector.shape_cast %72 : vector<1xf32> to vector<1x1x1xf32>
      %74 = vector.extract %73[0, 0, 0] : f32 from vector<1x1x1xf32>
      %75 = vector.shape_cast %61 : vector<8x1xf32> to vector<1x8x1xf32>
      %cst_52 = arith.constant dense<0.000000e+00> : vector<1xf32>
      %76 = vector.multi_reduction <add>, %75, %cst_52 [1, 2] : vector<1x8x1xf32> to vector<1xf32>
      %77 = vector.shape_cast %76 : vector<1xf32> to vector<1x1x1xf32>
      %78 = vector.extract %77[0, 0, 0] : f32 from vector<1x1x1xf32>
      %79 = arith.mulf %61, %61 : vector<8x1xf32>
      %80 = vector.shape_cast %79 : vector<8x1xf32> to vector<1x8x1xf32>
      %cst_53 = arith.constant dense<0.000000e+00> : vector<1xf32>
      %81 = vector.multi_reduction <add>, %80, %cst_53 [1, 2] : vector<1x8x1xf32> to vector<1xf32>
      %82 = vector.shape_cast %81 : vector<1xf32> to vector<1x1x1xf32>
      %83 = vector.extract %82[0, 0, 0] : f32 from vector<1x1x1xf32>
      %84 = arith.mulf %61, %66 : vector<8x1xf32>
      %85 = vector.shape_cast %84 : vector<8x1xf32> to vector<1x8x1xf32>
      %cst_54 = arith.constant dense<0.000000e+00> : vector<1xf32>
      %86 = vector.multi_reduction <add>, %85, %cst_54 [1, 2] : vector<1x8x1xf32> to vector<1xf32>
      %87 = vector.shape_cast %86 : vector<1xf32> to vector<1x1x1xf32>
      %88 = vector.extract %87[0, 0, 0] : f32 from vector<1x1x1xf32>
      %89 = vector.shape_cast %64 : vector<8x1xf32> to vector<1x8x1xf32>
      %cst_55 = arith.constant dense<0.000000e+00> : vector<1xf32>
      %90 = vector.multi_reduction <add>, %89, %cst_55 [1, 2] : vector<1x8x1xf32> to vector<1xf32>
      %91 = vector.shape_cast %90 : vector<1xf32> to vector<1x1x1xf32>
      %92 = vector.extract %91[0, 0, 0] : f32 from vector<1x1x1xf32>
      %93 = arith.mulf %66, %66 : vector<8x1xf32>
      %94 = vector.shape_cast %93 : vector<8x1xf32> to vector<1x8x1xf32>
      %cst_56 = arith.constant dense<0.000000e+00> : vector<1xf32>
      %95 = vector.multi_reduction <add>, %94, %cst_56 [1, 2] : vector<1x8x1xf32> to vector<1xf32>
      %96 = vector.shape_cast %95 : vector<1xf32> to vector<1x1x1xf32>
      %97 = vector.extract %96[0, 0, 0] : f32 from vector<1x1x1xf32>
      %c0_57 = arith.constant 0 : index
      %c0_58 = arith.constant 0 : index
      %98 = vector.load %arg8[%c0_57, %c0_58] : memref<8x10xf32, #tpu.memory_space<vmem>>, vector<8x10xf32>
      %cst_59 = arith.constant dense<0xFF800000> : vector<8xf32>
      %99 = vector.multi_reduction <maximumf>, %98, %cst_59 [1] : vector<8x10xf32> to vector<8xf32>
      %100 = vector.shape_cast %99 : vector<8xf32> to vector<8x1xf32>
      %101 = vector.broadcast %100 : vector<8x1xf32> to vector<8x10xf32>
      %102 = arith.subf %98, %101 : vector<8x10xf32>
      %103 = math.exp %102 : vector<8x10xf32>
      %cst_60 = arith.constant dense<0.000000e+00> : vector<8xf32>
      %104 = vector.multi_reduction <add>, %103, %cst_60 [1] : vector<8x10xf32> to vector<8xf32>
      %105 = vector.shape_cast %104 : vector<8xf32> to vector<8x1xf32>
      %106 = math.log %105 : vector<8x1xf32>
      %107 = arith.addf %106, %100 : vector<8x1xf32>
      %108 = tpu.iota {dimensions = array<i32: 1>} : vector<8x10xi32>
      %c0_61 = arith.constant 0 : index
      %c0_62 = arith.constant 0 : index
      %109 = vector.load %arg6[%c0_61, %c0_62] : memref<8x1xi32, #tpu.memory_space<vmem>>, vector<8x1xi32>
      %110 = vector.broadcast %109 : vector<8x1xi32> to vector<8x10xi32>
      %111 = arith.cmpi eq, %108, %110 : vector<8x10xi32>
      %cst_63 = arith.constant 0.000000e+00 : f32
      %112 = vector.broadcast %cst_63 : f32 to vector<8x10xf32>
      %113 = arith.select %111, %98, %112 : vector<8x10xi1>, vector<8x10xf32>
      %cst_64 = arith.constant dense<0.000000e+00> : vector<8xf32>
      %114 = vector.multi_reduction <add>, %113, %cst_64 [1] : vector<8x10xf32> to vector<8xf32>
      %115 = vector.shape_cast %114 : vector<8xf32> to vector<8x1xf32>
      %116 = arith.subf %107, %115 : vector<8x1xf32>
      %117 = vector.shape_cast %116 : vector<8x1xf32> to vector<1x8x1xf32>
      %cst_65 = arith.constant dense<0.000000e+00> : vector<1xf32>
      %118 = vector.multi_reduction <add>, %117, %cst_65 [1, 2] : vector<1x8x1xf32> to vector<1xf32>
      %119 = vector.shape_cast %118 : vector<1xf32> to vector<1x1x1xf32>
      %120 = vector.extract %119[0, 0, 0] : f32 from vector<1x1x1xf32>
      %121 = tpu.iota {dimensions = array<i32: 1>} : vector<1x8x128xi32>
      %cst_66 = arith.constant 0.000000e+00 : f32
      %122 = vector.broadcast %cst_66 : f32 to vector<1x8x128xf32>
      %c0_i32_67 = arith.constant 0 : i32
      %123 = vector.broadcast %c0_i32_67 : i32 to vector<1x8x128xi32>
      %124 = arith.cmpi eq, %121, %123 : vector<1x8x128xi32>
      %125 = vector.broadcast %70 : f32 to vector<1x8x128xf32>
      %126 = arith.select %124, %125, %122 : vector<1x8x128xi1>, vector<1x8x128xf32>
      %c1_i32 = arith.constant 1 : i32
      %127 = vector.broadcast %c1_i32 : i32 to vector<1x8x128xi32>
      %128 = arith.cmpi eq, %121, %127 : vector<1x8x128xi32>
      %129 = vector.broadcast %74 : f32 to vector<1x8x128xf32>
      %130 = arith.select %128, %129, %126 : vector<1x8x128xi1>, vector<1x8x128xf32>
      %c2_i32 = arith.constant 2 : i32
      %131 = vector.broadcast %c2_i32 : i32 to vector<1x8x128xi32>
      %132 = arith.cmpi eq, %121, %131 : vector<1x8x128xi32>
      %133 = vector.broadcast %78 : f32 to vector<1x8x128xf32>
      %134 = arith.select %132, %133, %130 : vector<1x8x128xi1>, vector<1x8x128xf32>
      %c3_i32 = arith.constant 3 : i32
      %135 = vector.broadcast %c3_i32 : i32 to vector<1x8x128xi32>
      %136 = arith.cmpi eq, %121, %135 : vector<1x8x128xi32>
      %137 = vector.broadcast %83 : f32 to vector<1x8x128xf32>
      %138 = arith.select %136, %137, %134 : vector<1x8x128xi1>, vector<1x8x128xf32>
      %c4_i32 = arith.constant 4 : i32
      %139 = vector.broadcast %c4_i32 : i32 to vector<1x8x128xi32>
      %140 = arith.cmpi eq, %121, %139 : vector<1x8x128xi32>
      %141 = vector.broadcast %88 : f32 to vector<1x8x128xf32>
      %142 = arith.select %140, %141, %138 : vector<1x8x128xi1>, vector<1x8x128xf32>
      %c5_i32 = arith.constant 5 : i32
      %143 = vector.broadcast %c5_i32 : i32 to vector<1x8x128xi32>
      %144 = arith.cmpi eq, %121, %143 : vector<1x8x128xi32>
      %145 = vector.broadcast %92 : f32 to vector<1x8x128xf32>
      %146 = arith.select %144, %145, %142 : vector<1x8x128xi1>, vector<1x8x128xf32>
      %c6_i32 = arith.constant 6 : i32
      %147 = vector.broadcast %c6_i32 : i32 to vector<1x8x128xi32>
      %148 = arith.cmpi eq, %121, %147 : vector<1x8x128xi32>
      %149 = vector.broadcast %97 : f32 to vector<1x8x128xf32>
      %150 = arith.select %148, %149, %146 : vector<1x8x128xi1>, vector<1x8x128xf32>
      %c7_i32 = arith.constant 7 : i32
      %151 = vector.broadcast %c7_i32 : i32 to vector<1x8x128xi32>
      %152 = arith.cmpi eq, %121, %151 : vector<1x8x128xi32>
      %153 = vector.broadcast %120 : f32 to vector<1x8x128xf32>
      %154 = arith.select %152, %153, %150 : vector<1x8x128xi1>, vector<1x8x128xf32>
      %c0_68 = arith.constant 0 : index
      %c0_69 = arith.constant 0 : index
      %c0_70 = arith.constant 0 : index
      %155 = vector.load %arg9[%c0_68, %c0_69, %c0_70] : memref<1x8x128xf32, #tpu.memory_space<vmem>>, vector<1x8x128xf32>
      tpu.vector_store %arg9[%c0_68, %c0_69, %c0_70], %154 {strides = array<i32>} : memref<1x8x128xf32, #tpu.memory_space<vmem>>, vector<1x8x128xf32>,
    } else {
    }
    return
  }
  func.func @transform_0(%arg0: i32, %arg1: i32) -> (i32, i32) {
    %c0_i32 = arith.constant 0 : i32
    %c0_i32_0 = arith.constant 0 : i32
    return %arg0, %c0_i32 : i32, i32
  }
  func.func @transform_1(%arg0: i32, %arg1: i32) -> (i32, i32) {
    %c0_i32 = arith.constant 0 : i32
    %c0_i32_0 = arith.constant 0 : i32
    return %arg1, %c0_i32 : i32, i32
  }
  func.func @transform_2(%arg0: i32, %arg1: i32) -> (i32, i32) {
    %c0_i32 = arith.constant 0 : i32
    %c0_i32_0 = arith.constant 0 : i32
    return %arg0, %c0_i32 : i32, i32
  }
  func.func @transform_3(%arg0: i32, %arg1: i32) -> (i32, i32) {
    %c0_i32 = arith.constant 0 : i32
    %c0_i32_0 = arith.constant 0 : i32
    return %c0_i32, %arg1 : i32, i32
  }
  func.func @transform_4(%arg0: i32, %arg1: i32) -> (i32, i32) {
    %c0_i32 = arith.constant 0 : i32
    %c0_i32_0 = arith.constant 0 : i32
    return %arg0, %c0_i32 : i32, i32
  }
  func.func @transform_5(%arg0: i32, %arg1: i32) -> (i32, i32) {
    %c0_i32 = arith.constant 0 : i32
    %c0_i32_0 = arith.constant 0 : i32
    return %c0_i32, %arg1 : i32, i32
  }
  func.func @transform_6(%arg0: i32, %arg1: i32) -> (i32, i32) {
    %c0_i32 = arith.constant 0 : i32
    %c0_i32_0 = arith.constant 0 : i32
    return %arg0, %c0_i32 : i32, i32
  }
  func.func @transform_7(%arg0: i32, %arg1: i32) -> (i32, i32, i32) {
    %c0_i32 = arith.constant 0 : i32
    %c0_i32_0 = arith.constant 0 : i32
    %c0_i32_1 = arith.constant 0 : i32
    return %arg0, %c0_i32, %c0_i32_0 : i32, i32, i32
  }
}

</mosaic_0001>

<llo_original>
// kernel: tpu_custom_call.1
$region0: #{tpu_custom_call.1}
  #allocation0 [shape = 'u32[]', space=smem, size = 0x4, offset = 0x4, fixed_abs, tag = 'smem constant byte address 0x4 - core index']
  #allocation1 [shape = 'u32[144,128]{1,0:T(1,128)}', space=vmem, size = 0x12000, scoped, tag = 'internal scratch']
  #allocation2 [shape = 'f32[8,1]{1,0:T(8,128)}', space=vmem, size = 0x1000, scoped, tag = 'scratch operand']
  #allocation3 [shape = 'f32[8,1]{1,0:T(8,128)}', space=vmem, size = 0x1000, scoped, tag = 'scratch operand']
  #allocation4 [shape = 'f32[8,1]{1,0:T(8,128)}', space=vmem, size = 0x1000, scoped, tag = 'scratch operand']
  #allocation5 [shape = 'f32[8,1]{1,0:T(8,128)}', space=vmem, size = 0x1000, scoped, tag = 'scratch operand']
  %s0 = inlined_call_operand.vmem [shape: f32[8,32], index: 0, kind: input, shape index: {}]
  %s1 = inlined_call_operand.vmem [shape: f32[8,32], index: 1, kind: input, shape index: {}]
  %s2 = inlined_call_operand.vmem [shape: f32[8,1], index: 2, kind: input, shape index: {}]
  %s3 = inlined_call_operand.vmem [shape: f32[1,8], index: 3, kind: input, shape index: {}]
  %s4 = inlined_call_operand.vmem [shape: s32[8,1], index: 4, kind: input, shape index: {}]
  %s5 = inlined_call_operand.vmem [shape: s32[1,8], index: 5, kind: input, shape index: {}]
  %s6 = inlined_call_operand.vmem [shape: f32[8,10], index: 6, kind: input, shape index: {}]
  %s7 = inlined_call_operand.hbm [shape: f32[1,8,128], index: 7, kind: output, shape index: {}]
  %s8 = sld [smem:[#allocation0]]
  $region46: #{tpu_custom_call.1} parent=0
    _
  %s10 = ssub.s32 1, %s8
  %s11 = scalar_select 0, %s10, %s8
  $region1: #{tpu_custom_call.1} parent=0
    #allocation6 [shape = 'u8[4096]{0}', space=vmem, size = 0x1000, scoped, tag = 'output window, operand 0, single buffered']
    #allocation7 [shape = 's32[1]{0}', space=sflag, size = 0x4, scoped, tag = 'scoped memory for tpu_custom_call.1']
    %12 = vsyncpa [#allocation7], 0
    // Predicated region
    $region2: #{tpu_custom_call.1} parent=1 // pred_check
      _
    $region3: #{tpu_custom_call.1} parent=1 // pred_check_branch
      %14 = sbr.rel (0) target = $region5
    $region4: #{tpu_custom_call.1} parent=1 // pred_region
      _
    $region5: #{tpu_custom_call.1} parent=1 // pred_fallthru
      _
    // Predicated region
    $region6: #{tpu_custom_call.1} parent=1 // pred_check
      _
    $region7: #{tpu_custom_call.1} parent=1 // pred_check_branch
      %16 = sbr.rel (0) target = $region9
    $region8: #{tpu_custom_call.1} parent=1 // pred_region
      _
    $region9: #{tpu_custom_call.1} parent=1 // pred_fallthru
      _
    // Predicated region
    $region10: #{tpu_custom_call.1} parent=1 // pred_check
      _
    $region11: #{tpu_custom_call.1} parent=1 // pred_check_branch
      %18 = sbr.rel (0) target = $region13
    $region12: #{tpu_custom_call.1} parent=1 // pred_region
      _
    $region13: #{tpu_custom_call.1} parent=1 // pred_fallthru
      _
    // Predicated region
    $region14: #{tpu_custom_call.1} parent=1 // pred_check
      _
    $region15: #{tpu_custom_call.1} parent=1 // pred_check_branch
      %20 = sbr.rel (0) target = $region17
    $region16: #{tpu_custom_call.1} parent=1 // pred_region
      _
    $region17: #{tpu_custom_call.1} parent=1 // pred_fallthru
      _
    // Predicated region
    $region18: #{tpu_custom_call.1} parent=1 // pred_check
      _
    $region19: #{tpu_custom_call.1} parent=1 // pred_check_branch
      %22 = sbr.rel (0) target = $region21
    $region20: #{tpu_custom_call.1} parent=1 // pred_region
      _
    $region21: #{tpu_custom_call.1} parent=1 // pred_fallthru
      _
    // Predicated region
    $region22: #{tpu_custom_call.1} parent=1 // pred_check
      _
    $region23: #{tpu_custom_call.1} parent=1 // pred_check_branch
      %24 = sbr.rel (0) target = $region25
    $region24: #{tpu_custom_call.1} parent=1 // pred_region
      _
    $region25: #{tpu_custom_call.1} parent=1 // pred_fallthru
      _
    // Predicated region
    $region26: #{tpu_custom_call.1} parent=1 // pred_check
      _
    $region27: #{tpu_custom_call.1} parent=1 // pred_check_branch
      %26 = sbr.rel (0) target = $region29
    $region28: #{tpu_custom_call.1} parent=1 // pred_region
      _
    $region29: #{tpu_custom_call.1} parent=1 // pred_fallthru
      _
    %p27 = scmp.eq.s32.totalorder 0, 0
    // Predicated region
    $region30: #{tpu_custom_call.1} parent=1 // pred_check
      %p28 = pneg %p27
    $region31: #{tpu_custom_call.1} parent=1 // pred_check_branch
      %30 = sbr.rel (%p28) target = $region33
    $region32: #{tpu_custom_call.1} parent=1 // pred_region
      %vm31 = vcmask 7168
      %32 = vst.msk [vmem:[#allocation2] sm:$0xff] %vm31, 0.0
      %33 = vst.msk [vmem:[#allocation3] sm:$0xff] %vm31, 0.0
      %34 = vst.msk [vmem:[#allocation4] sm:$0xff] %vm31, 0.0
      %35 = vst.msk [vmem:[#allocation5] sm:$0xff] %vm31, 0.0
    $region33: #{tpu_custom_call.1} parent=1 // pred_fallthru
      _
    %v36 = vld [vmem:[%s0] sm:$0xff]
    %v37 = vld [vmem:[%s1] sm:$0xff]
    %vm38 = vcmask 261120
    %v40 = vsel %vm38, %v36, 0
    %v43 = vsel %vm38, %v37, 0
    %45 = vmatprep.subr.mxu0 0.0
    %46 = vmatpush1.xpose.msra.mxu0 %v43
    %47 = vmatprep.subr.mxu0 0.0
    %48 = vmatpush1.xpose.msra.mxu0 0.0
    %49 = vmatprep.subr.mxu0 0.0
    %50 = vmatpush1.xpose.msra.mxu0 0.0
    %51 = vmatprep.subr.mxu0 0.0
    %52 = vmatpush1.xpose.msra.mxu0 0.0
    %53 = vmatprep.subr.mxu0 0.0
    %54 = vmatpush1.xpose.msra.mxu0 0.0
    %55 = vmatprep.subr.mxu0 0.0
    %56 = vmatpush1.xpose.msra.mxu0 0.0
    %57 = vmatprep.subr.mxu0 0.0
    %58 = vmatpush1.xpose.msra.mxu0 0.0
    %59 = vmatprep.subr.mxu0 0.0
    %60 = vmatpush1.xpose.msra.mxu0 0.0
    %61 = vmatprep.subr.mxu0 0.0
    %62 = vmatpush1.xpose.msra.mxu0 0.0
    %63 = vmatprep.subr.mxu0 0.0
    %64 = vmatpush1.xpose.msra.mxu0 0.0
    %65 = vmatprep.subr.mxu0 0.0
    %66 = vmatpush1.xpose.msra.mxu0 0.0
    %67 = vmatprep.subr.mxu0 0.0
    %68 = vmatpush1.xpose.msra.mxu0 0.0
    %69 = vmatprep.subr.mxu0 0.0
    %70 = vmatpush1.xpose.msra.mxu0 0.0
    %71 = vmatprep.subr.mxu0 0.0
    %72 = vmatpush1.xpose.msra.mxu0 0.0
    %73 = vmatprep.subr.mxu0 0.0
    %74 = vmatpush1.xpose.msra.mxu0 0.0
    %75 = vmatprep.subr.mxu0 0.0
    %76 = vmatpush1.xpose.msra.mxu0 0.0
    %77 = vmatprep.subr.mxu0 0.0
    %78 = vmatpush1.xpose.msra.mxu0 0.0
    %79 = vmatprep.subr.mxu0 0.0
    %80 = vmatpush1.xpose.msra.mxu0 0.0
    %81 = vmatprep.subr.mxu0 0.0
    %82 = vmatpush1.xpose.msra.mxu0 0.0
    %83 = vmatprep.subr.mxu0 0.0
    %84 = vmatpush1.xpose.msra.mxu0 0.0
    %85 = vmatprep.subr.mxu0 0.0
    %86 = vmatpush1.xpose.msra.mxu0 0.0
    %87 = vmatprep.subr.mxu0 0.0
    %88 = vmatpush1.xpose.msra.mxu0 0.0
    %89 = vmatprep.subr.mxu0 0.0
    %90 = vmatpush1.xpose.msra.mxu0 0.0
    %91 = vmatprep.subr.mxu0 0.0
    %92 = vmatpush1.xpose.msra.mxu0 0.0
    %93 = vmatprep.subr.mxu0 0.0
    %94 = vmatpush1.xpose.msra.mxu0 0.0
    %95 = vmatprep.subr.mxu0 0.0
    %96 = vmatpush1.xpose.msra.mxu0 0.0
    %97 = vmatprep.subr.mxu0 0.0
    %98 = vmatpush1.xpose.msra.mxu0 0.0
    %99 = vmatprep.subr.mxu0 0.0
    %100 = vmatpush1.xpose.msra.mxu0 0.0
    %101 = vmatprep.subr.mxu0 0.0
    %102 = vmatpush1.xpose.msra.mxu0 0.0
    %103 = vmatprep.subr.mxu0 0.0
    %104 = vmatpush1.xpose.msra.mxu0 0.0
    %105 = vmatprep.subr.mxu0 0.0
    %106 = vmatpush1.xpose.msra.mxu0 0.0
    %107 = vmatprep.subr.mxu0 0.0
    %108 = vmatpush1.xpose.msra.mxu0 0.0
    %109 = vmatprep.mubr.f32.mxu0 0.0
    %110 = vmatmul.mubr.f32.gmra.mrb[0].mxu0 %v40
    %v111 = vpop.f32.mrb[0].mxu0
    %v112 = vadd.f32 0.0, %v111
    %v113 = vpop.f32.mrb[0].mxu0
    %114 = vdwg.mxu0
    %v115 = vld [vmem:[%s2] sm:$0xff]
    %v116 = vld [vmem:[%s3] sm:$0x1]
    %118 = vset.pattern.permute.xlu0 0
    %119 = vperm.xlu0 %118, %v115
    %v120 = vpop.permute.xlu0 %119
    %v123 = vlaneseq
    %v124 = vshrl.u32 %v123, 7
    %v125 = vsub.s32 0, %v124
    %v126 = vrot.slane %v116, %v125
    %v128 = vadd.f32 %v120, %v126
    %v129 = vmul.f32 %v112, 2.0
    %v130 = vsub.f32 %v128, %v129
    %v131 = vmax.f32 %v130, 0.0
    %s132 = smul.u32 0, 8
    %v133 = vlaneseq
    %v134 = vshrl.u32 %v133, 7
    %v135 = vstv %s132
    %v136 = vadd.s32 %v135, %v134
    %s137 = smul.u32 0, 8
    %v138 = vlaneseq
    %v139 = vand.u32 %v138, 127
    %v140 = vstv %s137
    %v141 = vadd.s32 %v140, %v139
    %vm142 = vcmp.eq.s32.totalorder %v136, %v141
    %v143 = vsel %vm142, 0.0, %v131
    %v144 = vrsqrt.pop %v143
    %v145 = vmul.f32 %v143, %v144
    %vm146 = vcmp.eq.f32.partialorder %v143, inf
    %v147 = vsel %vm146, %v143, %v145
    %vm148 = vcmp.eq.f32.partialorder %v143, 0.0
    %v149 = vand.u32 %v143, 2147483648
    %v150 = vsel %vm148, %v149, %v147
    %v151 = vld [vmem:[%s4] sm:$0xff]
    %v152 = vld [vmem:[%s5] sm:$0x1]
    %153 = vset.pattern.permute.xlu0 0
    %154 = vperm.xlu0 %153, %v151
    %v155 = vpop.permute.xlu0 %154
    %v156 = vlaneseq
    %v157 = vshrl.u32 %v156, 7
    %v158 = vsub.s32 0, %v157
    %v159 = vrot.slane %v152, %v158
    %vm160 = vcmp.eq.s32.totalorder %v155, %v159
    %v161 = vld [vmem:[#allocation2] sm:$0xff]
    %vm162 = vcmask 64512
    %v163 = vsel %vm162, %v150, 0.0
    %164 = vadd.xlane.f32.xlu0 %v163
    %v165 = vpop.xlane.xlu0 %164
    %v166 = vadd.f32 %v161, %v165
    %vm167 = vcmask 7168
    %168 = vst.msk [vmem:[#allocation2] sm:$0xff] %vm167, %v166
    %v169 = vld [vmem:[#allocation3] sm:$0xff]
    %v170 = vsel %vm162, %v143, 0.0
    %171 = vadd.xlane.f32.xlu0 %v170
    %v172 = vpop.xlane.xlu0 %171
    %v173 = vadd.f32 %v169, %v172
    %174 = vst.msk [vmem:[#allocation3] sm:$0xff] %vm167, %v173
    %v175 = vld [vmem:[#allocation4] sm:$0xff]
    %v176 = vsel %vm160, 0.0, %v150
    %v177 = vsel %vm162, %v176, 0.0
    %178 = vadd.xlane.f32.xlu0 %v177
    %v179 = vpop.xlane.xlu0 %178
    %v180 = vadd.f32 %v175, %v179
    %181 = vst.msk [vmem:[#allocation4] sm:$0xff] %vm167, %v180
    %v182 = vld [vmem:[#allocation5] sm:$0xff]
    %v183 = vsel %vm160, 1.0, 0.0
    %v184 = vsel %vm162, %v183, 0.0
    %185 = vadd.xlane.f32.xlu0 %v184
    %v186 = vpop.xlane.xlu0 %185
    %v187 = vadd.f32 %v182, %v186
    %188 = vst.msk [vmem:[#allocation5] sm:$0xff] %vm167, %v187
    // Predicated region
    $region34: #{tpu_custom_call.1} parent=1 // pred_check
      %p189 = pneg %p27
    $region35: #{tpu_custom_call.1} parent=1 // pred_check_branch
      %191 = sbr.rel (%p189) target = $region37
    $region36: #{tpu_custom_call.1} parent=1 // pred_region
      %v192 = vld [vmem:[#allocation2] sm:$0xff]
      %v193 = vld [vmem:[#allocation3] sm:$0xff]
      %v194 = vld [vmem:[#allocation4] sm:$0xff]
      %v195 = vld [vmem:[#allocation5] sm:$0xff]
      %v196 = vsub.f32 8.0, %v195
      %v197 = vsel %vm167, %v193, 0.0
      %198 = vadd.xlane.f32.xlu0 %v197
      %v199 = vpop.xlane.xlu0 %198
      %v200 = vrot.slane %v199, 4
      %v201 = vadd.f32 %v199, %v200
      %v202 = vrot.slane %v201, 2
      %v203 = vadd.f32 %v201, %v202
      %v204 = vrot.slane %v203, 1
      %v205 = vadd.f32 %v203, %v204
      %s206 = vtos %v205
      %v207 = vsel %vm167, %v194, 0.0
      %208 = vadd.xlane.f32.xlu0 %v207
      %v209 = vpop.xlane.xlu0 %208
      %v210 = vrot.slane %v209, 4
      %v211 = vadd.f32 %v209, %v210
      %v212 = vrot.slane %v211, 2
      %v213 = vadd.f32 %v211, %v212
      %v214 = vrot.slane %v213, 1
      %v215 = vadd.f32 %v213, %v214
      %s216 = vtos %v215
      %v217 = vsel %vm167, %v192, 0.0
      %218 = vadd.xlane.f32.xlu0 %v217
      %v219 = vpop.xlane.xlu0 %218
      %v220 = vrot.slane %v219, 4
      %v221 = vadd.f32 %v219, %v220
      %v222 = vrot.slane %v221, 2
      %v223 = vadd.f32 %v221, %v222
      %v224 = vrot.slane %v223, 1
      %v225 = vadd.f32 %v223, %v224
      %s226 = vtos %v225
      %v227 = vmul.f32 %v192, %v192
      %v228 = vsel %vm167, %v227, 0.0
      %229 = vadd.xlane.f32.xlu0 %v228
      %v230 = vpop.xlane.xlu0 %229
      %v231 = vrot.slane %v230, 4
      %v232 = vadd.f32 %v230, %v231
      %v233 = vrot.slane %v232, 2
      %v234 = vadd.f32 %v232, %v233
      %v235 = vrot.slane %v234, 1
      %v236 = vadd.f32 %v234, %v235
      %s237 = vtos %v236
      %v238 = vmul.f32 %v192, %v196
      %v239 = vsel %vm167, %v238, 0.0
      %240 = vadd.xlane.f32.xlu0 %v239
      %v241 = vpop.xlane.xlu0 %240
      %v242 = vrot.slane %v241, 4
      %v243 = vadd.f32 %v241, %v242
      %v244 = vrot.slane %v243, 2
      %v245 = vadd.f32 %v243, %v244
      %v246 = vrot.slane %v245, 1
      %v247 = vadd.f32 %v245, %v246
      %s248 = vtos %v247
      %v249 = vsel %vm167, %v195, 0.0
      %250 = vadd.xlane.f32.xlu0 %v249
      %v251 = vpop.xlane.xlu0 %250
      %v252 = vrot.slane %v251, 4
      %v253 = vadd.f32 %v251, %v252
      %v254 = vrot.slane %v253, 2
      %v255 = vadd.f32 %v253, %v254
      %v256 = vrot.slane %v255, 1
      %v257 = vadd.f32 %v255, %v256
      %s258 = vtos %v257
      %v259 = vmul.f32 %v196, %v196
      %v260 = vsel %vm167, %v259, 0.0
      %261 = vadd.xlane.f32.xlu0 %v260
      %v262 = vpop.xlane.xlu0 %261
      %v263 = vrot.slane %v262, 4
      %v264 = vadd.f32 %v262, %v263
      %v265 = vrot.slane %v264, 2
      %v266 = vadd.f32 %v264, %v265
      %v267 = vrot.slane %v266, 1
      %v268 = vadd.f32 %v266, %v267
      %s269 = vtos %v268
      %v270 = vld [vmem:[%s6] sm:$0xff]
      %vm271 = vcmask 80896
      %v272 = vsel %vm271, %v270, -inf
      %273 = vmax.xlane.f32.xlu0 %v272
      %v274 = vpop.xlane.xlu0 %273
      %v275 = vsub.f32 %v270, %v274
      %v276 = vmul.f32 %v275, 1.442695
      %v277 = vpow.pop %v276
      %v278 = vsel %vm271, %v277, 0.0
      %279 = vadd.xlane.f32.xlu0 %v278
      %v280 = vpop.xlane.xlu0 %279
      %v281 = vlog2.pop %v280
      %v282 = vmul.f32 %v281, 0.6931472
      %v283 = vadd.f32 %v282, %v274
      %v284 = vld [vmem:[%s4] sm:$0xff]
      %285 = vset.pattern.permute.xlu0 0
      %286 = vperm.xlu0 %285, %v284
      %v287 = vpop.permute.xlu0 %286
      %vm288 = vcmp.eq.s32.totalorder %v139, %v287
      %v289 = vsel %vm288, %v270, 0.0
      %v290 = vsel %vm271, %v289, 0.0
      %291 = vadd.xlane.f32.xlu0 %v290
      %v292 = vpop.xlane.xlu0 %291
      %v293 = vsub.f32 %v283, %v292
      %v294 = vsel %vm167, %v293, 0.0
      %295 = vadd.xlane.f32.xlu0 %v294
      %v296 = vpop.xlane.xlu0 %295
      %v297 = vrot.slane %v296, 4
      %v298 = vadd.f32 %v296, %v297
      %v299 = vrot.slane %v298, 2
      %v300 = vadd.f32 %v298, %v299
      %v301 = vrot.slane %v300, 1
      %v302 = vadd.f32 %v300, %v301
      %s303 = vtos %v302
      %vm304 = vcmp.eq.s32.totalorder %v134, 0
      %v305 = vstv %s206
      %v306 = vsel %vm304, %v305, 0.0
      %vm307 = vcmp.eq.s32.totalorder %v134, 1
      %v308 = vstv %s216
      %v309 = vsel %vm307, %v308, %v306
      %vm310 = vcmp.eq.s32.totalorder %v134, 2
      %v311 = vstv %s226
      %v312 = vsel %vm310, %v311, %v309
      %vm313 = vcmp.eq.s32.totalorder %v134, 3
      %v314 = vstv %s237
      %v315 = vsel %vm313, %v314, %v312
      %vm316 = vcmp.eq.s32.totalorder %v134, 4
      %v317 = vstv %s248
      %v318 = vsel %vm316, %v317, %v315
      %vm319 = vcmp.eq.s32.totalorder %v134, 5
      %v320 = vstv %s258
      %v321 = vsel %vm319, %v320, %v318
      %vm322 = vcmp.eq.s32.totalorder %v134, 6
      %v323 = vstv %s269
      %v324 = vsel %vm322, %v323, %v321
      %vm325 = vcmp.eq.s32.totalorder %v134, 7
      %v326 = vstv %s303
      %v327 = vsel %vm325, %v326, %v324
      %328 = vst [vmem:[#allocation6] sm:$0xff] %v327
    $region37: #{tpu_custom_call.1} parent=1 // pred_fallthru
      _
    // Predicated region
    $region38: #{tpu_custom_call.1} parent=1 // pred_check
      _
    $region39: #{tpu_custom_call.1} parent=1 // pred_check_branch
      %330 = sbr.rel (0) target = $region41
    $region40: #{tpu_custom_call.1} parent=1 // pred_region
      %s332 = ssub.s32 128, 128
      %333 = vsyncadd [#allocation7], %s332
      %s335 = sshll.u32 [#allocation6], 4
      %s336 = int_to_ptr.vmem [resolvable:$true] %s335
      %338 = dma.vmem_to_hbm [thread:$0]  %s336, 128, %s7, [#allocation7]
    $region41: #{tpu_custom_call.1} parent=1 // pred_fallthru
      _
    // Predicated region
    $region42: #{tpu_custom_call.1} parent=1 // pred_check
      _
    $region43: #{tpu_custom_call.1} parent=1 // pred_check_branch
      %340 = sbr.rel (0) target = $region45
    $region44: #{tpu_custom_call.1} parent=1 // pred_region
      %341 = dma.done [#allocation7], 128
    $region45: #{tpu_custom_call.1} parent=1 // pred_fallthru
      _
    %342 = vsyncpa [#allocation7], 1

</llo_original>
